<compile_context>
chip_gen: v7x
topology: tpu7x:2x2x1
jax: 0.10.0
libtpu: 0.0.40
codegen_flags: <defaults>
</compile_context>

<pallas_src>
import jax
import jax.numpy as jnp
from jax.experimental import pallas as pl
from jax.experimental.pallas import tpu as pltpu


def _modrelu_kernel(b_ref, re_ref, im_ref, ore_ref, oim_ref):
    re = re_ref[...]
    im = im_ref[...]
    b = b_ref[0, 0]                                   # scalar offset (SMEM)
    relu_b = jnp.maximum(b, jnp.float32(0.0))

    s2 = re * re + im * im                            # |z|^2
    # ReLU(|z| + b) / |z| == max(1 + b * rsqrt(|z|^2), 0)  for |z| > 0
    scale = jnp.maximum(jnp.float32(1.0) + b * jax.lax.rsqrt(s2),
                        jnp.float32(0.0))
    nonzero = s2 > jnp.float32(0.0)
    # z == 0: angle(0) == 0  ->  output is ReLU(b) + 0j  (matches torch)
    ore_ref[...] = jnp.where(nonzero, re * scale, relu_b)
    oim_ref[...] = jnp.where(nonzero, im * scale, jnp.float32(0.0))


def _round_up(x: int, m: int) -> int:
    return ((x + m - 1) // m) * m


def modrelu_planar(re, im, b, *, lanes=1024, max_block_rows=256):
    """modReLU on split float32 real/imag planes of identical shape."""
    shape = re.shape
    n = re.size

    rows = pl.cdiv(n, lanes)
    rows = _round_up(rows, 8)
    tr = min(max_block_rows, rows)            # multiple of 8 by construction
    rows_p = _round_up(rows, tr)
    n_p = rows_p * lanes

    re_f = re.reshape(-1)
    im_f = im.reshape(-1)
    if n_p != n:                              # pad to the tile grain
        re_f = jnp.pad(re_f, (0, n_p - n))
        im_f = jnp.pad(im_f, (0, n_p - n))
    re2 = re_f.reshape(rows_p, lanes)
    im2 = im_f.reshape(rows_p, lanes)
    b2d = jnp.asarray(b, dtype=jnp.float32).reshape(1, 1)

    def blk():
        return pl.BlockSpec((tr, lanes), lambda i: (i, 0))

    out_re, out_im = pl.pallas_call(
        _modrelu_kernel,
        out_shape=(
            jax.ShapeDtypeStruct((rows_p, lanes), jnp.float32),
            jax.ShapeDtypeStruct((rows_p, lanes), jnp.float32),
        ),
        grid_spec=pltpu.PrefetchScalarGridSpec(
            num_scalar_prefetch=0,
            grid=(rows_p // tr,),
            in_specs=[
                pl.BlockSpec(memory_space=pltpu.SMEM),   # b (scalar)
                blk(),                                   # real plane
                blk(),                                   # imag plane
            ],
            out_specs=[blk(), blk()],
        ),
        compiler_params=pltpu.CompilerParams(
            dimension_semantics=("parallel",),  # blocks independent; v7x 2-TC
        ),
    )(b2d, re2, im2)

    out_re = out_re.reshape(-1)[:n].reshape(shape)
    out_im = out_im.reshape(-1)[:n].reshape(shape)
    return out_re, out_im


def modrelu(z, b):
    """Apply modReLU to a complex64 tensor of arbitrary shape (e.g. NCHW)."""
    # TODO(synk): lax.bitcast_convert_type rejects complex dtypes, so the
    # split/merge below stays as two fused XLA passes around the kernel;
    # CompilerParams(allow_input_fusion=...) could fold the split into the
    # kernel's input DMA once validated on all target generations.
    re = jnp.real(z).astype(jnp.float32)
    im = jnp.imag(z).astype(jnp.float32)
    out_re, out_im = modrelu_planar(re, im, b)
    return jax.lax.complex(out_re, out_im)


def modrelu_ref(z, b):
    mag = jnp.abs(z)
    theta = jnp.angle(z)
    r = jnp.maximum(mag + b, 0.0)
    return (r * jnp.exp(1j * theta)).astype(jnp.complex64)


if __name__ == "__main__":
    key = jax.random.PRNGKey(0)
    kre, kim = jax.random.split(key)
    N, C, H, W = 2, 4, 16, 16  # layout: NCHW, complex64
    zre = jax.random.normal(kre, (N, C, H, W), dtype=jnp.float32)
    zim = jax.random.normal(kim, (N, C, H, W), dtype=jnp.float32)
    z = (zre + 1j * zim).astype(jnp.complex64)

    # nn.Parameter is initialized to 0.0 in the module; use a deterministic
    # non-trivial value so the ReLU offset actually clips some magnitudes.
    b = jnp.float32(-0.5)

    out = modrelu(z, b)
    jax.block_until_ready(out)

    ref = modrelu_ref(z, b)
    assert out.shape == z.shape and out.dtype == jnp.complex64
    assert jnp.allclose(out, ref, atol=1e-5, rtol=1e-5)

    print("KERNEL_OK")
</pallas_src>

<mosaic_0001>
module attributes {stable_mosaic.version = 11 : i64} {
  func.func @_modrelu_kernel(%arg0: i32, %arg1: memref<1x1xf32, #tpu.memory_space<smem>>, %arg2: memref<8x1024xf32, #tpu.memory_space<vmem>>, %arg3: memref<8x1024xf32, #tpu.memory_space<vmem>>, %arg4: memref<8x1024xf32, #tpu.memory_space<vmem>>, %arg5: memref<8x1024xf32, #tpu.memory_space<vmem>>) attributes {dimension_semantics = [#tpu.dimension_semantics<parallel>], iteration_bounds = array<i64: 1>, scalar_prefetch = 0 : i64, scratch_operands = 0 : i64, tpu.core_type = #tpu.core_type<tc>, window_params = [{transform_indices = @transform_0, window_bounds = array<i64: 1, 1>}, {transform_indices = @transform_1, window_bounds = array<i64: 8, 1024>}, {transform_indices = @transform_2, window_bounds = array<i64: 8, 1024>}, {transform_indices = @transform_3, window_bounds = array<i64: 8, 1024>}, {transform_indices = @transform_4, window_bounds = array<i64: 8, 1024>}]} {
    %c0 = arith.constant 0 : index
    %c0_0 = arith.constant 0 : index
    %0 = vector.load %arg2[%c0, %c0_0] : memref<8x1024xf32, #tpu.memory_space<vmem>>, vector<8x1024xf32>
    %c0_1 = arith.constant 0 : index
    %c0_2 = arith.constant 0 : index
    %1 = vector.load %arg3[%c0_1, %c0_2] : memref<8x1024xf32, #tpu.memory_space<vmem>>, vector<8x1024xf32>
    %c0_3 = arith.constant 0 : index
    %c0_4 = arith.constant 0 : index
    %2 = memref.load %arg1[%c0_3, %c0_4] : memref<1x1xf32, #tpu.memory_space<smem>>
    %cst = arith.constant 0.000000e+00 : f32
    %3 = arith.maximumf %2, %cst : f32
    %4 = arith.mulf %0, %0 : vector<8x1024xf32>
    %5 = arith.mulf %1, %1 : vector<8x1024xf32>
    %6 = arith.addf %4, %5 : vector<8x1024xf32>
    %7 = math.rsqrt %6 : vector<8x1024xf32>
    %8 = vector.broadcast %2 : f32 to vector<8x1024xf32>
    %9 = arith.mulf %8, %7 : vector<8x1024xf32>
    %cst_5 = arith.constant 1.000000e+00 : f32
    %10 = vector.broadcast %cst_5 : f32 to vector<8x1024xf32>
    %11 = arith.addf %10, %9 : vector<8x1024xf32>
    %cst_6 = arith.constant 0.000000e+00 : f32
    %12 = vector.broadcast %cst_6 : f32 to vector<8x1024xf32>
    %13 = arith.maximumf %11, %12 : vector<8x1024xf32>
    %cst_7 = arith.constant 0.000000e+00 : f32
    %14 = vector.broadcast %cst_7 : f32 to vector<8x1024xf32>
    %15 = arith.cmpf ogt, %6, %14 : vector<8x1024xf32>
    %16 = arith.mulf %0, %13 : vector<8x1024xf32>
    %17 = vector.broadcast %3 : f32 to vector<8x1024xf32>
    %18 = arith.select %15, %16, %17 : vector<8x1024xi1>, vector<8x1024xf32>
    %c0_8 = arith.constant 0 : index
    %c0_9 = arith.constant 0 : index
    %19 = vector.load %arg4[%c0_8, %c0_9] : memref<8x1024xf32, #tpu.memory_space<vmem>>, vector<8x1024xf32>
    tpu.vector_store %arg4[%c0_8, %c0_9], %18 {strides = array<i32>} : memref<8x1024xf32, #tpu.memory_space<vmem>>, vector<8x1024xf32>,
    %20 = arith.mulf %1, %13 : vector<8x1024xf32>
    %cst_10 = arith.constant 0.000000e+00 : f32
    %21 = vector.broadcast %cst_10 : f32 to vector<8x1024xf32>
    %22 = arith.select %15, %20, %21 : vector<8x1024xi1>, vector<8x1024xf32>
    %c0_11 = arith.constant 0 : index
    %c0_12 = arith.constant 0 : index
    %23 = vector.load %arg5[%c0_11, %c0_12] : memref<8x1024xf32, #tpu.memory_space<vmem>>, vector<8x1024xf32>
    tpu.vector_store %arg5[%c0_11, %c0_12], %22 {strides = array<i32>} : memref<8x1024xf32, #tpu.memory_space<vmem>>, vector<8x1024xf32>,
    return
  }
  func.func @transform_0(%arg0: i32) -> (i32, i32) {
    %c0_i32 = arith.constant 0 : i32
    %c0_i32_0 = arith.constant 0 : i32
    %c0_i32_1 = arith.constant 0 : i32
    return %c0_i32, %c0_i32_0 : i32, i32
  }
  func.func @transform_1(%arg0: i32) -> (i32, i32) {
    %c0_i32 = arith.constant 0 : i32
    %c0_i32_0 = arith.constant 0 : i32
    return %arg0, %c0_i32 : i32, i32
  }
  func.func @transform_2(%arg0: i32) -> (i32, i32) {
    %c0_i32 = arith.constant 0 : i32
    %c0_i32_0 = arith.constant 0 : i32
    return %arg0, %c0_i32 : i32, i32
  }
  func.func @transform_3(%arg0: i32) -> (i32, i32) {
    %c0_i32 = arith.constant 0 : i32
    %c0_i32_0 = arith.constant 0 : i32
    return %arg0, %c0_i32 : i32, i32
  }
  func.func @transform_4(%arg0: i32) -> (i32, i32) {
    %c0_i32 = arith.constant 0 : i32
    %c0_i32_0 = arith.constant 0 : i32
    return %arg0, %c0_i32 : i32, i32
  }
}

</mosaic_0001>

<llo_original>
// kernel: tpu_custom_call.1
$region0: #{tpu_custom_call.1}
  #allocation0 [shape = 'u32[]', space=smem, size = 0x4, offset = 0x4, fixed_abs, tag = 'smem constant byte address 0x4 - core index']
  #allocation1 [shape = 'u32[144,128]{1,0:T(1,128)}', space=vmem, size = 0x12000, scoped, tag = 'internal scratch']
  #allocation2 [shape = 'f32[1,1]{1,0:T(1,128)S(6)}', space=smem, size = 0x200, scoped, tag = 'scoped memory for tpu_custom_call.1']
  %s0 = inlined_call_operand.<no memory space> [shape: f32[1,1], index: 0, kind: input, shape index: {}]
  %s1 = inlined_call_operand.hbm [shape: f32[8,1024], index: 1, kind: input, shape index: {}]
  %s2 = inlined_call_operand.hbm [shape: f32[8,1024], index: 2, kind: input, shape index: {}]
  %s3 = inlined_call_operand.hbm [shape: f32[8,1024], index: 3, kind: output, shape index: {0}]
  %s4 = inlined_call_operand.hbm [shape: f32[8,1024], index: 4, kind: output, shape index: {1}]
  %5 = xla_tuple %s3, %s4
  %s6 = sld [smem:[#allocation0]]
  $region38: #{tpu_custom_call.1} parent=0
    _
  %s8 = ssub.s32 1, %s6
  %s9 = scalar_select 0, %s8, %s6
  %10 = sst [smem:[#allocation2]] %s0
  $region1: #{tpu_custom_call.1} parent=0
    #allocation3 [shape = 'u8[32768]{0}', space=vmem, size = 0x8000, scoped, tag = 'input window, operand 1, single buffered']
    #allocation4 [shape = 's32[1]{0}', space=sflag, size = 0x4, scoped, tag = 'scoped memory for tpu_custom_call.1']
    #allocation5 [shape = 's32[1]{0}', space=sflag, size = 0x4, scoped, tag = 'scoped memory for tpu_custom_call.1']
    #allocation6 [shape = 'u8[32768]{0}', space=vmem, size = 0x8000, scoped, tag = 'input window, operand 2, single buffered']
    #allocation7 [shape = 's32[1]{0}', space=sflag, size = 0x4, scoped, tag = 'scoped memory for tpu_custom_call.1']
    #allocation8 [shape = 'u8[32768]{0}', space=vmem, size = 0x8000, scoped, tag = 'output window, operand 0, single buffered']
    #allocation9 [shape = 'u8[32768]{0}', space=vmem, size = 0x8000, scoped, tag = 'output window, operand 1, single buffered']
    #allocation10 [shape = 's32[1]{0}', space=sflag, size = 0x4, scoped, tag = 'scoped memory for tpu_custom_call.1']
    %11 = vsyncpa [#allocation4], 0
    %12 = vsyncpa [#allocation7], 0
    %13 = vsyncpa [#allocation5], 0
    %14 = vsyncpa [#allocation10], 0
    // Predicated region
    $region2: #{tpu_custom_call.1} parent=1 // pred_check
      _
    $region3: #{tpu_custom_call.1} parent=1 // pred_check_branch
      %16 = sbr.rel (0) target = $region5
    $region4: #{tpu_custom_call.1} parent=1 // pred_region
      _
    $region5: #{tpu_custom_call.1} parent=1 // pred_fallthru
      _
    // Predicated region
    $region6: #{tpu_custom_call.1} parent=1 // pred_check
      _
    $region7: #{tpu_custom_call.1} parent=1 // pred_check_branch
      %18 = sbr.rel (0) target = $region9
    $region8: #{tpu_custom_call.1} parent=1 // pred_region
      %s20 = ssub.s32 1024, 1024
      %21 = vsyncadd [#allocation4], %s20
      %s23 = sshll.u32 [#allocation3], 4
      %s24 = int_to_ptr.vmem [resolvable:$true] %s23
      %26 = dma.hbm_to_vmem [thread:$0]  %s1, 1024, %s24, [#allocation4]
    $region9: #{tpu_custom_call.1} parent=1 // pred_fallthru
      _
    // Predicated region
    $region10: #{tpu_custom_call.1} parent=1 // pred_check
      _
    $region11: #{tpu_custom_call.1} parent=1 // pred_check_branch
      %28 = sbr.rel (0) target = $region13
    $region12: #{tpu_custom_call.1} parent=1 // pred_region
      %s30 = ssub.s32 1024, 1024
      %31 = vsyncadd [#allocation7], %s30
      %s33 = sshll.u32 [#allocation6], 4
      %s34 = int_to_ptr.vmem [resolvable:$true] %s33
      %36 = dma.hbm_to_vmem [thread:$0]  %s2, 1024, %s34, [#allocation7]
    $region13: #{tpu_custom_call.1} parent=1 // pred_fallthru
      _
    // Predicated region
    $region14: #{tpu_custom_call.1} parent=1 // pred_check
      _
    $region15: #{tpu_custom_call.1} parent=1 // pred_check_branch
      %38 = sbr.rel (0) target = $region17
    $region16: #{tpu_custom_call.1} parent=1 // pred_region
      %39 = dma.done [#allocation4], 1024
    $region17: #{tpu_custom_call.1} parent=1 // pred_fallthru
      _
    // Predicated region
    $region18: #{tpu_custom_call.1} parent=1 // pred_check
      _
    $region19: #{tpu_custom_call.1} parent=1 // pred_check_branch
      %41 = sbr.rel (0) target = $region21
    $region20: #{tpu_custom_call.1} parent=1 // pred_region
      %42 = dma.done [#allocation7], 1024
    $region21: #{tpu_custom_call.1} parent=1 // pred_fallthru
      _
    %v43 = vld [vmem:[#allocation3] sm:$0xff]
    %v44 = vld [vmem:[#allocation3 + $0x8] sm:$0xff]
    %v45 = vld [vmem:[#allocation3 + $0x10] sm:$0xff]
    %v46 = vld [vmem:[#allocation3 + $0x18] sm:$0xff]
    %v47 = vld [vmem:[#allocation3 + $0x20] sm:$0xff]
    %v48 = vld [vmem:[#allocation3 + $0x28] sm:$0xff]
    %v49 = vld [vmem:[#allocation3 + $0x30] sm:$0xff]
    %v50 = vld [vmem:[#allocation3 + $0x38] sm:$0xff]
    %v51 = vld [vmem:[#allocation6] sm:$0xff]
    %v52 = vld [vmem:[#allocation6 + $0x8] sm:$0xff]
    %v53 = vld [vmem:[#allocation6 + $0x10] sm:$0xff]
    %v54 = vld [vmem:[#allocation6 + $0x18] sm:$0xff]
    %v55 = vld [vmem:[#allocation6 + $0x20] sm:$0xff]
    %v56 = vld [vmem:[#allocation6 + $0x28] sm:$0xff]
    %v57 = vld [vmem:[#allocation6 + $0x30] sm:$0xff]
    %v58 = vld [vmem:[#allocation6 + $0x38] sm:$0xff]
    %s59 = sld [smem:[#allocation2]]
    %s60 = smax.f32 %s59, 0.0
    %v61 = vmul.f32 %v43, %v43
    %v62 = vmul.f32 %v44, %v44
    %v63 = vmul.f32 %v45, %v45
    %v64 = vmul.f32 %v46, %v46
    %v65 = vmul.f32 %v47, %v47
    %v66 = vmul.f32 %v48, %v48
    %v67 = vmul.f32 %v49, %v49
    %v68 = vmul.f32 %v50, %v50
    %v69 = vmul.f32 %v51, %v51
    %v70 = vmul.f32 %v52, %v52
    %v71 = vmul.f32 %v53, %v53
    %v72 = vmul.f32 %v54, %v54
    %v73 = vmul.f32 %v55, %v55
    %v74 = vmul.f32 %v56, %v56
    %v75 = vmul.f32 %v57, %v57
    %v76 = vmul.f32 %v58, %v58
    %v77 = vadd.f32 %v61, %v69
    %v78 = vadd.f32 %v62, %v70
    %v79 = vadd.f32 %v63, %v71
    %v80 = vadd.f32 %v64, %v72
    %v81 = vadd.f32 %v65, %v73
    %v82 = vadd.f32 %v66, %v74
    %v83 = vadd.f32 %v67, %v75
    %v84 = vadd.f32 %v68, %v76
    %v85 = vrsqrt.pop %v77
    %v86 = vrsqrt.pop %v78
    %v87 = vrsqrt.pop %v79
    %v88 = vrsqrt.pop %v80
    %v89 = vrsqrt.pop %v81
    %v90 = vrsqrt.pop %v82
    %v91 = vrsqrt.pop %v83
    %v92 = vrsqrt.pop %v84
    %v93 = vstv %s59
    %v94 = vmul.f32 %v93, %v85
    %v95 = vmul.f32 %v93, %v86
    %v96 = vmul.f32 %v93, %v87
    %v97 = vmul.f32 %v93, %v88
    %v98 = vmul.f32 %v93, %v89
    %v99 = vmul.f32 %v93, %v90
    %v100 = vmul.f32 %v93, %v91
    %v101 = vmul.f32 %v93, %v92
    %v102 = vadd.f32 %v94, 1.0
    %v103 = vadd.f32 %v95, 1.0
    %v104 = vadd.f32 %v96, 1.0
    %v105 = vadd.f32 %v97, 1.0
    %v106 = vadd.f32 %v98, 1.0
    %v107 = vadd.f32 %v99, 1.0
    %v108 = vadd.f32 %v100, 1.0
    %v109 = vadd.f32 %v101, 1.0
    %v110 = vmax.f32 %v102, 0.0
    %v111 = vmax.f32 %v103, 0.0
    %v112 = vmax.f32 %v104, 0.0
    %v113 = vmax.f32 %v105, 0.0
    %v114 = vmax.f32 %v106, 0.0
    %v115 = vmax.f32 %v107, 0.0
    %v116 = vmax.f32 %v108, 0.0
    %v117 = vmax.f32 %v109, 0.0
    %vm118 = vcmp.gt.f32.partialorder %v77, 0.0
    %vm119 = vcmp.gt.f32.partialorder %v78, 0.0
    %vm120 = vcmp.gt.f32.partialorder %v79, 0.0
    %vm121 = vcmp.gt.f32.partialorder %v80, 0.0
    %vm122 = vcmp.gt.f32.partialorder %v81, 0.0
    %vm123 = vcmp.gt.f32.partialorder %v82, 0.0
    %vm124 = vcmp.gt.f32.partialorder %v83, 0.0
    %vm125 = vcmp.gt.f32.partialorder %v84, 0.0
    %v126 = vmul.f32 %v43, %v110
    %v127 = vmul.f32 %v44, %v111
    %v128 = vmul.f32 %v45, %v112
    %v129 = vmul.f32 %v46, %v113
    %v130 = vmul.f32 %v47, %v114
    %v131 = vmul.f32 %v48, %v115
    %v132 = vmul.f32 %v49, %v116
    %v133 = vmul.f32 %v50, %v117
    %v134 = vstv %s60
    %v135 = vsel %vm118, %v126, %v134
    %v136 = vsel %vm119, %v127, %v134
    %v137 = vsel %vm120, %v128, %v134
    %v138 = vsel %vm121, %v129, %v134
    %v139 = vsel %vm122, %v130, %v134
    %v140 = vsel %vm123, %v131, %v134
    %v141 = vsel %vm124, %v132, %v134
    %v142 = vsel %vm125, %v133, %v134
    %143 = vst [vmem:[#allocation8] sm:$0xff] %v135
    %144 = vst [vmem:[#allocation8 + $0x8] sm:$0xff] %v136
    %145 = vst [vmem:[#allocation8 + $0x10] sm:$0xff] %v137
    %146 = vst [vmem:[#allocation8 + $0x18] sm:$0xff] %v138
    %147 = vst [vmem:[#allocation8 + $0x20] sm:$0xff] %v139
    %148 = vst [vmem:[#allocation8 + $0x28] sm:$0xff] %v140
    %149 = vst [vmem:[#allocation8 + $0x30] sm:$0xff] %v141
    %150 = vst [vmem:[#allocation8 + $0x38] sm:$0xff] %v142
    %v151 = vmul.f32 %v51, %v110
    %v152 = vmul.f32 %v52, %v111
    %v153 = vmul.f32 %v53, %v112
    %v154 = vmul.f32 %v54, %v113
    %v155 = vmul.f32 %v55, %v114
    %v156 = vmul.f32 %v56, %v115
    %v157 = vmul.f32 %v57, %v116
    %v158 = vmul.f32 %v58, %v117
    %v159 = vsel %vm118, %v151, 0.0
    %v160 = vsel %vm119, %v152, 0.0
    %v161 = vsel %vm120, %v153, 0.0
    %v162 = vsel %vm121, %v154, 0.0
    %v163 = vsel %vm122, %v155, 0.0
    %v164 = vsel %vm123, %v156, 0.0
    %v165 = vsel %vm124, %v157, 0.0
    %v166 = vsel %vm125, %v158, 0.0
    %167 = vst [vmem:[#allocation9] sm:$0xff] %v159
    %168 = vst [vmem:[#allocation9 + $0x8] sm:$0xff] %v160
    %169 = vst [vmem:[#allocation9 + $0x10] sm:$0xff] %v161
    %170 = vst [vmem:[#allocation9 + $0x18] sm:$0xff] %v162
    %171 = vst [vmem:[#allocation9 + $0x20] sm:$0xff] %v163
    %172 = vst [vmem:[#allocation9 + $0x28] sm:$0xff] %v164
    %173 = vst [vmem:[#allocation9 + $0x30] sm:$0xff] %v165
    %174 = vst [vmem:[#allocation9 + $0x38] sm:$0xff] %v166
    // Predicated region
    $region22: #{tpu_custom_call.1} parent=1 // pred_check
      _
    $region23: #{tpu_custom_call.1} parent=1 // pred_check_branch
      %176 = sbr.rel (0) target = $region25
    $region24: #{tpu_custom_call.1} parent=1 // pred_region
      %s178 = ssub.s32 1024, 1024
      %179 = vsyncadd [#allocation5], %s178
      %s181 = sshll.u32 [#allocation8], 4
      %s182 = int_to_ptr.vmem [resolvable:$true] %s181
      %184 = dma.vmem_to_hbm [thread:$0]  %s182, 1024, %s3, [#allocation5]
    $region25: #{tpu_custom_call.1} parent=1 // pred_fallthru
      _
    // Predicated region
    $region26: #{tpu_custom_call.1} parent=1 // pred_check
      _
    $region27: #{tpu_custom_call.1} parent=1 // pred_check_branch
      %186 = sbr.rel (0) target = $region29
    $region28: #{tpu_custom_call.1} parent=1 // pred_region
      %s188 = ssub.s32 1024, 1024
      %189 = vsyncadd [#allocation10], %s188
      %s191 = sshll.u32 [#allocation9], 4
      %s192 = int_to_ptr.vmem [resolvable:$true] %s191
      %194 = dma.vmem_to_hbm [thread:$0]  %s192, 1024, %s4, [#allocation10]
    $region29: #{tpu_custom_call.1} parent=1 // pred_fallthru
      _
    // Predicated region
    $region30: #{tpu_custom_call.1} parent=1 // pred_check
      _
    $region31: #{tpu_custom_call.1} parent=1 // pred_check_branch
      %196 = sbr.rel (0) target = $region33
    $region32: #{tpu_custom_call.1} parent=1 // pred_region
      %197 = dma.done [#allocation5], 1024
    $region33: #{tpu_custom_call.1} parent=1 // pred_fallthru
      _
    // Predicated region
    $region34: #{tpu_custom_call.1} parent=1 // pred_check
      _
    $region35: #{tpu_custom_call.1} parent=1 // pred_check_branch
      %199 = sbr.rel (0) target = $region37
    $region36: #{tpu_custom_call.1} parent=1 // pred_region
      %200 = dma.done [#allocation10], 1024
    $region37: #{tpu_custom_call.1} parent=1 // pred_fallthru
      _
    %201 = vsyncpa [#allocation4], 1
    %202 = vsyncpa [#allocation7], 1
    %203 = vsyncpa [#allocation5], 1
    %204 = vsyncpa [#allocation10], 1

</llo_original>
